<compile_context>
chip_gen: v5e
topology: v5e:2x2
jax: 0.10.0
libtpu: 0.0.40
codegen_flags: <defaults>
</compile_context>

<pallas_src>
import jax
import jax.numpy as jnp
from jax.experimental import pallas as pl
from jax.experimental.pallas import tpu as pltpu

LANE = 128
F_IN = 1433                       # Cora feature dim (from the module)
HIDDEN = 8 * 16                   # 128
F_OUT = 7
F_IN_PAD = 1536                   # 1433 -> 1536 (lane aligned)
F_OUT_PAD = 128                   # 7 -> 128 (lane-dense output, unmasked vst)
VMEM_LIMIT = 48 * 1024 * 1024     # headroom below v7x's 64 MiB physical VMEM


def _round_up(n, m):
    return ((n + m - 1) // m) * m


# ----------------------------------------------------------------------------
# Toy-size path: whole model fused in one grid-less kernel (everything < 1 MiB)
# ----------------------------------------------------------------------------
def _fused_gcn_kernel(adj_ref, x_ref, w1_ref, b1_ref, w2_ref, b2_ref, o_ref):
    # Layer 1: feature transform first (F_in >> N), then aggregation.
    xw1 = jnp.dot(x_ref[...], w1_ref[...],              # bf16 x bf16 -> f32
                  preferred_element_type=jnp.float32)
    h1 = jnp.dot(adj_ref[...], xw1,                     # f32 adj: no edge-weight quantization
                 preferred_element_type=jnp.float32)
    h1 = jnp.maximum(h1 + b1_ref[...], 0.0)             # bias + ReLU in f32 (VPU)
    # Layer 2 (all tiny f32 matmuls).
    xw2 = jnp.dot(h1, w2_ref[...], preferred_element_type=jnp.float32)
    h2 = jnp.dot(adj_ref[...], xw2, preferred_element_type=jnp.float32)
    o_ref[...] = h2 + b2_ref[...]


def gcn_forward_small(adj_f32, x_bf16, w1_bf16, b1, w2_f32, b2):
    """Fused 2-layer GCN for small graphs: single launch, whole arrays in VMEM."""
    n = adj_f32.shape[0]
    vmem = pl.BlockSpec(memory_space=pltpu.MemorySpace.VMEM)
    return pl.pallas_call(
        _fused_gcn_kernel,
        out_shape=jax.ShapeDtypeStruct((n, F_OUT_PAD), jnp.float32),
        in_specs=[vmem] * 6,
        out_specs=vmem,
        compiler_params=pltpu.CompilerParams(vmem_limit_bytes=VMEM_LIMIT),
    )(adj_f32, x_bf16, w1_bf16, b1, w2_f32, b2)


# ----------------------------------------------------------------------------
# Cora-scale path: node-row tiled, 3 stages, "parallel" row axis (megacore).
# ----------------------------------------------------------------------------
def _xw1_kernel(x_ref, w1_ref, o_ref):
    # Stage A: XW1 row block = X_rows @ W1 (computed exactly once per row).
    o_ref[...] = jnp.dot(x_ref[...], w1_ref[...],
                         preferred_element_type=jnp.float32)


def _layer1_kernel(adj_ref, xw1_ref, b1_ref, w2_ref, o_ref):
    # Stage B: XW2 row block = relu(adj_rows @ XW1_full + b1) @ W2.
    h1 = jnp.dot(adj_ref[...], xw1_ref[...], preferred_element_type=jnp.float32)
    h1 = jnp.maximum(h1 + b1_ref[...], 0.0)
    o_ref[...] = jnp.dot(h1, w2_ref[...], preferred_element_type=jnp.float32)


def _layer2_kernel(adj_ref, xw2_ref, b2_ref, o_ref):
    # Stage C: OUT row block = adj_rows @ XW2_full + b2.
    o_ref[...] = jnp.dot(adj_ref[...], xw2_ref[...],
                         preferred_element_type=jnp.float32) + b2_ref[...]


def gcn_forward_tiled(adj_f32, x_bf16, w1_bf16, b1, w2_f32, b2, *, row_t=256):
    """Row-tiled 2-layer GCN (the scaled path).

    row_t=256 fills the v6e/v7x 256-wide MXU; use 128 on v5e. The row axis is
    "parallel" so v7x's two TensorCores both run. XW1 is produced once in
    stage A and only consumed (never recomputed) by the per-row-block stages.
    """
    n_pad = adj_f32.shape[0]
    assert n_pad % row_t == 0, "pad the node dimension to a multiple of row_t"
    grid = (n_pad // row_t,)
    cp = pltpu.CompilerParams(dimension_semantics=("parallel",),
                              vmem_limit_bytes=VMEM_LIMIT)

    def row(shape):     # row-block of the node dimension
        return pl.BlockSpec(shape, lambda i: (i, 0))

    def const(shape):   # resident operand (same block every step -> fetched once)
        return pl.BlockSpec(shape, lambda i: (0, 0))

    # Stage A: XW1 = X @ W1  (dominant K=1536 matmul, bf16 on the MXU).
    xw1 = pl.pallas_call(
        _xw1_kernel,
        out_shape=jax.ShapeDtypeStruct((n_pad, HIDDEN), jnp.float32),
        grid=grid,
        in_specs=[row((row_t, F_IN_PAD)), const((F_IN_PAD, HIDDEN))],
        out_specs=row((row_t, HIDDEN)),
        compiler_params=cp,
    )(x_bf16, w1_bf16)

    # Stage B: XW2 = relu(adj @ XW1 + b1) @ W2, row-tiled; adj stays f32.
    xw2 = pl.pallas_call(
        _layer1_kernel,
        out_shape=jax.ShapeDtypeStruct((n_pad, F_OUT_PAD), jnp.float32),
        grid=grid,
        in_specs=[row((row_t, n_pad)), const((n_pad, HIDDEN)),
                  const((1, HIDDEN)), const((HIDDEN, F_OUT_PAD))],
        out_specs=row((row_t, F_OUT_PAD)),
        compiler_params=cp,
    )(adj_f32, xw1, b1, w2_f32)

    # Stage C: OUT = adj @ XW2 + b2, row-tiled.
    out = pl.pallas_call(
        _layer2_kernel,
        out_shape=jax.ShapeDtypeStruct((n_pad, F_OUT_PAD), jnp.float32),
        grid=grid,
        in_specs=[row((row_t, n_pad)), const((n_pad, F_OUT_PAD)),
                  const((1, F_OUT_PAD))],
        out_specs=row((row_t, F_OUT_PAD)),
        compiler_params=cp,
    )(adj_f32, xw2, b2)
    return out


# ----------------------------------------------------------------------------
# Host-side helpers
# ----------------------------------------------------------------------------
def _glorot(key, shape):
    fan_in, fan_out = shape
    limit = jnp.sqrt(6.0 / (fan_in + fan_out))
    return jax.random.uniform(key, shape, jnp.float32, -limit, limit)


def init_params(key):
    k1, k2 = jax.random.split(key)
    return {
        "w1": _glorot(k1, (F_IN, HIDDEN)),
        "b1": jnp.zeros((1, HIDDEN), jnp.float32),
        "w2": _glorot(k2, (HIDDEN, F_OUT)),
        "b2": jnp.zeros((1, F_OUT), jnp.float32),
    }


def build_graph(key, n):
    """Synthetic undirected graph with self-loops; returns D^-1/2 A D^-1/2."""
    rand = jax.random.uniform(key, (n, n))
    adj = (rand + rand.T > 1.4).astype(jnp.float32)
    adj = jnp.maximum(adj, jnp.eye(n, dtype=jnp.float32))
    deg = adj.sum(axis=1)
    d_inv_sqrt = 1.0 / jnp.sqrt(deg)
    return d_inv_sqrt[:, None] * adj * d_inv_sqrt[None, :]


def pad_inputs(adj_hat, features, params, n_pad=None):
    """Zero-pad to lane-aligned shapes (exact) and cast only X/W1 to bf16."""
    n = features.shape[0]
    if n_pad is None:
        n_pad = n
    adj_p = jnp.pad(adj_hat, ((0, n_pad - n), (0, n_pad - n)))            # f32
    x_p = jnp.pad(features, ((0, n_pad - n), (0, F_IN_PAD - F_IN))
                  ).astype(jnp.bfloat16)
    w1_p = jnp.pad(params["w1"], ((0, F_IN_PAD - F_IN), (0, 0))
                   ).astype(jnp.bfloat16)
    w2_p = jnp.pad(params["w2"], ((0, 0), (0, F_OUT_PAD - F_OUT)))        # f32
    b2_p = jnp.pad(params["b2"], ((0, 0), (0, F_OUT_PAD - F_OUT)))        # f32
    return adj_p, x_p, w1_p, params["b1"], w2_p, b2_p


def gcn_reference(adj_hat, features, params):
    """Pure-f32 reference of the original module semantics."""
    h1 = jnp.maximum(adj_hat @ (features @ params["w1"]) + params["b1"], 0.0)
    return adj_hat @ (h1 @ params["w2"]) + params["b2"]


if __name__ == "__main__":
    key = jax.random.PRNGKey(0)
    k_g1, k_f1, k_g2, k_f2, k_p = jax.random.split(key, 5)
    params = init_params(k_p)

    # ---- Path 1: toy graph (N=32), grid-less fused kernel ----
    N_SMALL = 32
    adj_s = build_graph(k_g1, N_SMALL)
    feat_s = jax.random.normal(k_f1, (N_SMALL, F_IN), jnp.float32)
    args_s = pad_inputs(adj_s, feat_s, params)
    out_s = jax.jit(gcn_forward_small)(*args_s)
    jax.block_until_ready(out_s)
    out_s = out_s[:N_SMALL, :F_OUT]
    ref_s = gcn_reference(adj_s, feat_s, params)
    assert out_s.shape == (N_SMALL, F_OUT)
    assert jnp.allclose(out_s, ref_s, atol=3e-2, rtol=3e-2), "small path mismatch"

    # ---- Path 2: larger graph, node-row-tiled 3-stage path (Cora-scale) ----
    ROW_T = 256                      # 256 for v6e/v7x MXU; use 128 on v5e.
    N_BIG = 600
    N_BIG_PAD = _round_up(N_BIG, ROW_T)          # 600 -> 768 (3 row tiles)
    adj_b = build_graph(k_g2, N_BIG)
    feat_b = jax.random.normal(k_f2, (N_BIG, F_IN), jnp.float32)
    args_b = pad_inputs(adj_b, feat_b, params, n_pad=N_BIG_PAD)
    tiled_fwd = jax.jit(lambda *a: gcn_forward_tiled(*a, row_t=ROW_T))
    out_b = tiled_fwd(*args_b)
    jax.block_until_ready(out_b)
    out_b = out_b[:N_BIG, :F_OUT]
    ref_b = gcn_reference(adj_b, feat_b, params)
    assert out_b.shape == (N_BIG, F_OUT)
    assert jnp.allclose(out_b, ref_b, atol=3e-2, rtol=3e-2), "tiled path mismatch"

    print("KERNEL_OK")
</pallas_src>

<mosaic_0001>
module attributes {stable_mosaic.version = 11 : i64} {
  func.func @_fused_gcn_kernel(%arg0: memref<32x32xf32, #tpu.memory_space<vmem>>, %arg1: memref<32x1536xbf16, #tpu.memory_space<vmem>>, %arg2: memref<1536x128xbf16, #tpu.memory_space<vmem>>, %arg3: memref<1x128xf32, #tpu.memory_space<vmem>>, %arg4: memref<128x128xf32, #tpu.memory_space<vmem>>, %arg5: memref<1x128xf32, #tpu.memory_space<vmem>>, %arg6: memref<32x128xf32, #tpu.memory_space<vmem>>) attributes {dimension_semantics = [], scalar_prefetch = 0 : i64, scratch_operands = 0 : i64, tpu.core_type = #tpu.core_type<tc>} {
    %c0 = arith.constant 0 : index
    %c0_0 = arith.constant 0 : index
    %0 = vector.load %arg1[%c0, %c0_0] : memref<32x1536xbf16, #tpu.memory_space<vmem>>, vector<32x1536xbf16>
    %c0_1 = arith.constant 0 : index
    %c0_2 = arith.constant 0 : index
    %1 = vector.load %arg2[%c0_1, %c0_2] : memref<1536x128xbf16, #tpu.memory_space<vmem>>, vector<1536x128xbf16>
    %cst = arith.constant dense<0.000000e+00> : vector<32x128xf32>
    %2 = tpu.matmul %0, %1, %cst {dimension_numbers = #tpu.dot_dimension_numbers<[1], [0], [0], [1], [0, 0, 1, 1], [], []>} : vector<32x1536xbf16>, vector<1536x128xbf16>, vector<32x128xf32> -> vector<32x128xf32>
    %c0_3 = arith.constant 0 : index
    %c0_4 = arith.constant 0 : index
    %3 = vector.load %arg0[%c0_3, %c0_4] : memref<32x32xf32, #tpu.memory_space<vmem>>, vector<32x32xf32>
    %cst_5 = arith.constant dense<0.000000e+00> : vector<32x128xf32>
    %4 = tpu.matmul %3, %2, %cst_5 {dimension_numbers = #tpu.dot_dimension_numbers<[1], [0], [0], [1], [0, 0, 1, 1], [], []>} : vector<32x32xf32>, vector<32x128xf32>, vector<32x128xf32> -> vector<32x128xf32>
    %c0_6 = arith.constant 0 : index
    %c0_7 = arith.constant 0 : index
    %5 = vector.load %arg3[%c0_6, %c0_7] : memref<1x128xf32, #tpu.memory_space<vmem>>, vector<1x128xf32>
    %6 = vector.broadcast %5 : vector<1x128xf32> to vector<32x128xf32>
    %7 = arith.addf %4, %6 : vector<32x128xf32>
    %cst_8 = arith.constant 0.000000e+00 : f32
    %8 = vector.broadcast %cst_8 : f32 to vector<32x128xf32>
    %9 = arith.maximumf %7, %8 : vector<32x128xf32>
    %c0_9 = arith.constant 0 : index
    %c0_10 = arith.constant 0 : index
    %10 = vector.load %arg4[%c0_9, %c0_10] : memref<128x128xf32, #tpu.memory_space<vmem>>, vector<128x128xf32>
    %cst_11 = arith.constant dense<0.000000e+00> : vector<32x128xf32>
    %11 = tpu.matmul %9, %10, %cst_11 {dimension_numbers = #tpu.dot_dimension_numbers<[1], [0], [0], [1], [0, 0, 1, 1], [], []>} : vector<32x128xf32>, vector<128x128xf32>, vector<32x128xf32> -> vector<32x128xf32>
    %c0_12 = arith.constant 0 : index
    %c0_13 = arith.constant 0 : index
    %12 = vector.load %arg0[%c0_12, %c0_13] : memref<32x32xf32, #tpu.memory_space<vmem>>, vector<32x32xf32>
    %cst_14 = arith.constant dense<0.000000e+00> : vector<32x128xf32>
    %13 = tpu.matmul %12, %11, %cst_14 {dimension_numbers = #tpu.dot_dimension_numbers<[1], [0], [0], [1], [0, 0, 1, 1], [], []>} : vector<32x32xf32>, vector<32x128xf32>, vector<32x128xf32> -> vector<32x128xf32>
    %c0_15 = arith.constant 0 : index
    %c0_16 = arith.constant 0 : index
    %14 = vector.load %arg5[%c0_15, %c0_16] : memref<1x128xf32, #tpu.memory_space<vmem>>, vector<1x128xf32>
    %15 = vector.broadcast %14 : vector<1x128xf32> to vector<32x128xf32>
    %16 = arith.addf %13, %15 : vector<32x128xf32>
    %c0_17 = arith.constant 0 : index
    %c0_18 = arith.constant 0 : index
    %17 = vector.load %arg6[%c0_17, %c0_18] : memref<32x128xf32, #tpu.memory_space<vmem>>, vector<32x128xf32>
    tpu.vector_store %arg6[%c0_17, %c0_18], %16 {strides = array<i32>} : memref<32x128xf32, #tpu.memory_space<vmem>>, vector<32x128xf32>,
    return
  }
}

</mosaic_0001>

<llo_original>
// kernel: gcn_forward_small.1
$region0: #{gcn_forward_small.1}
  #allocation0 [shape = 'u32[]', space=smem, size = 0x4, offset = 0x4, fixed_abs, tag = 'smem constant byte address 0x4 - core index']
  #allocation1 [shape = 'u32[72,128]{1,0:T(1,128)}', space=vmem, size = 0x9000, scoped, tag = 'internal scratch']
  %s0 = inlined_call_operand.hbm [shape: f32[32,32], index: 0, kind: input, shape index: {}]
  %s1 = inlined_call_operand.hbm [shape: bf16[32,1536], index: 1, kind: input, shape index: {}]
  %s2 = inlined_call_operand.hbm [shape: bf16[1536,128], index: 2, kind: input, shape index: {}]
  %s3 = inlined_call_operand.vmem [shape: f32[1,128], index: 3, kind: input, shape index: {}]
  %s4 = inlined_call_operand.hbm [shape: f32[128,128], index: 4, kind: input, shape index: {}]
  %s5 = inlined_call_operand.vmem [shape: f32[1,128], index: 5, kind: input, shape index: {}]
  %s6 = inlined_call_operand.hbm [shape: f32[32,128], index: 6, kind: output, shape index: {}]
  %s7 = sld [smem:[#allocation0]]
  $region50: #{gcn_forward_small.1} parent=0
    _
  %s9 = ssub.s32 1, %s7
  %s10 = scalar_select 0, %s9, %s7
  $region1: #{gcn_forward_small.1} parent=0
    #allocation2 [shape = 'u8[16384]{0}', space=vmem, size = 0x4000, scoped, tag = 'input window, operand 0, single buffered']
    #allocation3 [shape = 's32[1]{0}', space=sflag, size = 0x4, scoped, tag = 'scoped memory for gcn_forward_small.1']
    #allocation4 [shape = 's32[1]{0}', space=sflag, size = 0x4, scoped, tag = 'scoped memory for gcn_forward_small.1']
    #allocation5 [shape = 'u8[98304]{0}', space=vmem, size = 0x18000, scoped, tag = 'input window, operand 1, single buffered']
    #allocation6 [shape = 's32[1]{0}', space=sflag, size = 0x4, scoped, tag = 'scoped memory for gcn_forward_small.1']
    #allocation7 [shape = 'u8[393216]{0}', space=vmem, size = 0x60000, scoped, tag = 'input window, operand 2, single buffered']
    #allocation8 [shape = 'u8[65536]{0}', space=vmem, size = 0x10000, scoped, tag = 'input window, operand 4, single buffered']
    #allocation9 [shape = 's32[1]{0}', space=sflag, size = 0x4, scoped, tag = 'scoped memory for gcn_forward_small.1']
    #allocation10 [shape = 'u8[16384]{0}', space=vmem, size = 0x4000, scoped, tag = 'output window, operand 0, single buffered']
    %11 = vsyncpa [#allocation3], 0
    %12 = vsyncpa [#allocation6], 0
    %13 = vsyncpa [#allocation9], 0
    %14 = vsyncpa [#allocation4], 0
    // Predicated region
    $region2: #{gcn_forward_small.1} parent=1 // pred_check
      _
    $region3: #{gcn_forward_small.1} parent=1 // pred_check_branch
      %16 = sbr.rel (0) target = $region5
    $region4: #{gcn_forward_small.1} parent=1 // pred_region
      %18 = vsyncadd [#allocation3], 0
      %s19 = sshll.u32 %s0, 4
      %s20 = int_to_ptr.hbm [resolvable:$true] %s19
      %s21 = sshll.u32 [#allocation2], 4
      %s22 = int_to_ptr.vmem [resolvable:$true] %s21
      %27 = dma.hbm_to_vmem [thread:$0]  %s20, 512, %s22, [#allocation3], 128, 128, 8
    $region5: #{gcn_forward_small.1} parent=1 // pred_fallthru
      _
    // Predicated region
    $region6: #{gcn_forward_small.1} parent=1 // pred_check
      _
    $region7: #{gcn_forward_small.1} parent=1 // pred_check_branch
      %29 = sbr.rel (0) target = $region9
    $region8: #{gcn_forward_small.1} parent=1 // pred_region
      %31 = vsyncadd [#allocation6], 0
      %s32 = sshll.u32 %s1, 4
      %s33 = int_to_ptr.hbm [resolvable:$true] %s32
      %s34 = sshll.u32 [#allocation5], 4
      %s35 = int_to_ptr.vmem [resolvable:$true] %s34
      %40 = dma.hbm_to_vmem [thread:$0]  %s33, 3072, %s35, [#allocation6], 768, 768, 48
    $region9: #{gcn_forward_small.1} parent=1 // pred_fallthru
      _
    // Predicated region
    $region10: #{gcn_forward_small.1} parent=1 // pred_check
      _
    $region11: #{gcn_forward_small.1} parent=1 // pred_check_branch
      %42 = sbr.rel (0) target = $region13
    $region12: #{gcn_forward_small.1} parent=1 // pred_region
      %44 = vsyncadd [#allocation6], 0
      %s45 = sshll.u32 %s2, 4
      %s46 = int_to_ptr.hbm [resolvable:$true] %s45
      %s47 = sshll.u32 [#allocation7], 4
      %s48 = int_to_ptr.vmem [resolvable:$true] %s47
      %53 = dma.hbm_to_vmem [thread:$0]  %s46, 12288, %s48, [#allocation6], 64, 64, 4
    $region13: #{gcn_forward_small.1} parent=1 // pred_fallthru
      _
    // Predicated region
    $region14: #{gcn_forward_small.1} parent=1 // pred_check
      _
    $region15: #{gcn_forward_small.1} parent=1 // pred_check_branch
      %55 = sbr.rel (0) target = $region17
    $region16: #{gcn_forward_small.1} parent=1 // pred_region
      _
    $region17: #{gcn_forward_small.1} parent=1 // pred_fallthru
      _
    // Predicated region
    $region18: #{gcn_forward_small.1} parent=1 // pred_check
      _
    $region19: #{gcn_forward_small.1} parent=1 // pred_check_branch
      %57 = sbr.rel (0) target = $region21
    $region20: #{gcn_forward_small.1} parent=1 // pred_region
      %59 = vsyncadd [#allocation9], 0
      %s60 = sshll.u32 %s4, 4
      %s61 = int_to_ptr.hbm [resolvable:$true] %s60
      %s62 = sshll.u32 [#allocation8], 4
      %s63 = int_to_ptr.vmem [resolvable:$true] %s62
      %68 = dma.hbm_to_vmem [thread:$0]  %s61, 2048, %s63, [#allocation9], 128, 128, 8
    $region21: #{gcn_forward_small.1} parent=1 // pred_fallthru
      _
    // Predicated region
    $region22: #{gcn_forward_small.1} parent=1 // pred_check
      _
    $region23: #{gcn_forward_small.1} parent=1 // pred_check_branch
      %70 = sbr.rel (0) target = $region25
    $region24: #{gcn_forward_small.1} parent=1 // pred_region
      _
    $region25: #{gcn_forward_small.1} parent=1 // pred_fallthru
      _
    // Predicated region
    $region26: #{gcn_forward_small.1} parent=1 // pred_check
      _
    $region27: #{gcn_forward_small.1} parent=1 // pred_check_branch
      %72 = sbr.rel (0) target = $region29
    $region28: #{gcn_forward_small.1} parent=1 // pred_region
      %74 = dma.done [#allocation3], 512
    $region29: #{gcn_forward_small.1} parent=1 // pred_fallthru
      _
    // Predicated region
    $region30: #{gcn_forward_small.1} parent=1 // pred_check
      _
    $region31: #{gcn_forward_small.1} parent=1 // pred_check_branch
      %76 = sbr.rel (0) target = $region33
    $region32: #{gcn_forward_small.1} parent=1 // pred_region
      %78 = dma.done [#allocation6], 3072
    $region33: #{gcn_forward_small.1} parent=1 // pred_fallthru
      _
    // Predicated region
    $region34: #{gcn_forward_small.1} parent=1 // pred_check
      _
    $region35: #{gcn_forward_small.1} parent=1 // pred_check_branch
      %80 = sbr.rel (0) target = $region37
    $region36: #{gcn_forward_small.1} parent=1 // pred_region
      %82 = dma.done [#allocation6], 12288
    $region37: #{gcn_forward_small.1} parent=1 // pred_fallthru
      _
    // Predicated region
    $region38: #{gcn_forward_small.1} parent=1 // pred_check
      _
    $region39: #{gcn_forward_small.1} parent=1 // pred_check_branch
      %84 = sbr.rel (0) target = $region41
    $region40: #{gcn_forward_small.1} parent=1 // pred_region
      %86 = dma.done [#allocation9], 2048
    $region41: #{gcn_forward_small.1} parent=1 // pred_fallthru
      _
    %v87 = vld [vmem:[#allocation5] sm:$0xff]
    %v88 = vld [vmem:[#allocation5 + $0x8] sm:$0xff]
    %v89 = vld [vmem:[#allocation5 + $0x10] sm:$0xff]
    %v90 = vld [vmem:[#allocation5 + $0x18] sm:$0xff]
    %v91 = vld [vmem:[#allocation5 + $0x20] sm:$0xff]
    %v92 = vld [vmem:[#allocation5 + $0x28] sm:$0xff]
    %v93 = vld [vmem:[#allocation5 + $0x30] sm:$0xff]
    %v94 = vld [vmem:[#allocation5 + $0x38] sm:$0xff]
    %v95 = vld [vmem:[#allocation5 + $0x40] sm:$0xff]
    %v96 = vld [vmem:[#allocation5 + $0x48] sm:$0xff]
    %v97 = vld [vmem:[#allocation5 + $0x50] sm:$0xff]
    %v98 = vld [vmem:[#allocation5 + $0x58] sm:$0xff]
    %v99 = vld [vmem:[#allocation5 + $0x60] sm:$0xff]
    %v100 = vld [vmem:[#allocation5 + $0x68] sm:$0xff]
    %v101 = vld [vmem:[#allocation5 + $0x70] sm:$0xff]
    %v102 = vld [vmem:[#allocation5 + $0x78] sm:$0xff]
    %v103 = vld [vmem:[#allocation5 + $0x80] sm:$0xff]
    %v104 = vld [vmem:[#allocation5 + $0x88] sm:$0xff]
    %v105 = vld [vmem:[#allocation5 + $0x90] sm:$0xff]
    %v106 = vld [vmem:[#allocation5 + $0x98] sm:$0xff]
    %v107 = vld [vmem:[#allocation5 + $0xa0] sm:$0xff]
    %v108 = vld [vmem:[#allocation5 + $0xa8] sm:$0xff]
    %v109 = vld [vmem:[#allocation5 + $0xb0] sm:$0xff]
    %v110 = vld [vmem:[#allocation5 + $0xb8] sm:$0xff]
    %v111 = vld [vmem:[#allocation7] sm:$0xf]
    %v112 = vld [vmem:[#allocation7 + $0x4] sm:$0xf]
    %v113 = vld [vmem:[#allocation7 + $0x8] sm:$0xf]
    %v114 = vld [vmem:[#allocation7 + $0xc] sm:$0xf]
    %v115 = vld [vmem:[#allocation7 + $0x10] sm:$0xf]
    %v116 = vld [vmem:[#allocation7 + $0x14] sm:$0xf]
    %v117 = vld [vmem:[#allocation7 + $0x18] sm:$0xf]
    %v118 = vld [vmem:[#allocation7 + $0x1c] sm:$0xf]
    %v119 = vld [vmem:[#allocation7 + $0x20] sm:$0xf]
    %v120 = vld [vmem:[#allocation7 + $0x24] sm:$0xf]
    %v121 = vld [vmem:[#allocation7 + $0x28] sm:$0xf]
    %v122 = vld [vmem:[#allocation7 + $0x2c] sm:$0xf]
    %v123 = vld [vmem:[#allocation7 + $0x30] sm:$0xf]
    %v124 = vld [vmem:[#allocation7 + $0x34] sm:$0xf]
    %v125 = vld [vmem:[#allocation7 + $0x38] sm:$0xf]
    %v126 = vld [vmem:[#allocation7 + $0x3c] sm:$0xf]
    %v127 = vld [vmem:[#allocation7 + $0x40] sm:$0xf]
    %v128 = vld [vmem:[#allocation7 + $0x44] sm:$0xf]
    %v129 = vld [vmem:[#allocation7 + $0x48] sm:$0xf]
    %v130 = vld [vmem:[#allocation7 + $0x4c] sm:$0xf]
    %v131 = vld [vmem:[#allocation7 + $0x50] sm:$0xf]
    %v132 = vld [vmem:[#allocation7 + $0x54] sm:$0xf]
    %v133 = vld [vmem:[#allocation7 + $0x58] sm:$0xf]
    %v134 = vld [vmem:[#allocation7 + $0x5c] sm:$0xf]
    %v135 = vld [vmem:[#allocation7 + $0x60] sm:$0xf]
    %v136 = vld [vmem:[#allocation7 + $0x64] sm:$0xf]
    %v137 = vld [vmem:[#allocation7 + $0x68] sm:$0xf]
    %v138 = vld [vmem:[#allocation7 + $0x6c] sm:$0xf]
    %v139 = vld [vmem:[#allocation7 + $0x70] sm:$0xf]
    %v140 = vld [vmem:[#allocation7 + $0x74] sm:$0xf]
    %v141 = vld [vmem:[#allocation7 + $0x78] sm:$0xf]
    %v142 = vld [vmem:[#allocation7 + $0x7c] sm:$0xf]
    %v143 = vld [vmem:[#allocation7 + $0x80] sm:$0xf]
    %v144 = vld [vmem:[#allocation7 + $0x84] sm:$0xf]
    %v145 = vld [vmem:[#allocation7 + $0x88] sm:$0xf]
    %v146 = vld [vmem:[#allocation7 + $0x8c] sm:$0xf]
    %v147 = vld [vmem:[#allocation7 + $0x90] sm:$0xf]
    %v148 = vld [vmem:[#allocation7 + $0x94] sm:$0xf]
    %v149 = vld [vmem:[#allocation7 + $0x98] sm:$0xf]
    %v150 = vld [vmem:[#allocation7 + $0x9c] sm:$0xf]
    %v151 = vld [vmem:[#allocation7 + $0xa0] sm:$0xf]
    %v152 = vld [vmem:[#allocation7 + $0xa4] sm:$0xf]
    %v153 = vld [vmem:[#allocation7 + $0xa8] sm:$0xf]
    %v154 = vld [vmem:[#allocation7 + $0xac] sm:$0xf]
    %v155 = vld [vmem:[#allocation7 + $0xb0] sm:$0xf]
    %v156 = vld [vmem:[#allocation7 + $0xb4] sm:$0xf]
    %v157 = vld [vmem:[#allocation7 + $0xb8] sm:$0xf]
    %v158 = vld [vmem:[#allocation7 + $0xbc] sm:$0xf]
    %v159 = vld [vmem:[#allocation7 + $0xc0] sm:$0xf]
    %v160 = vld [vmem:[#allocation7 + $0xc4] sm:$0xf]
    %v161 = vld [vmem:[#allocation7 + $0xc8] sm:$0xf]
    %v162 = vld [vmem:[#allocation7 + $0xcc] sm:$0xf]
    %v163 = vld [vmem:[#allocation7 + $0xd0] sm:$0xf]
    %v164 = vld [vmem:[#allocation7 + $0xd4] sm:$0xf]
    %v165 = vld [vmem:[#allocation7 + $0xd8] sm:$0xf]
    %v166 = vld [vmem:[#allocation7 + $0xdc] sm:$0xf]
    %v167 = vld [vmem:[#allocation7 + $0xe0] sm:$0xf]
    %v168 = vld [vmem:[#allocation7 + $0xe4] sm:$0xf]
    %v169 = vld [vmem:[#allocation7 + $0xe8] sm:$0xf]
    %v170 = vld [vmem:[#allocation7 + $0xec] sm:$0xf]
    %v171 = vld [vmem:[#allocation7 + $0xf0] sm:$0xf]
    %v172 = vld [vmem:[#allocation7 + $0xf4] sm:$0xf]
    %v173 = vld [vmem:[#allocation7 + $0xf8] sm:$0xf]
    %v174 = vld [vmem:[#allocation7 + $0xfc] sm:$0xf]
    %v175 = vld [vmem:[#allocation7 + $0x100] sm:$0xf]
    %v176 = vld [vmem:[#allocation7 + $0x104] sm:$0xf]
    %v177 = vld [vmem:[#allocation7 + $0x108] sm:$0xf]
    %v178 = vld [vmem:[#allocation7 + $0x10c] sm:$0xf]
    %v179 = vld [vmem:[#allocation7 + $0x110] sm:$0xf]
    %v180 = vld [vmem:[#allocation7 + $0x114] sm:$0xf]
    %v181 = vld [vmem:[#allocation7 + $0x118] sm:$0xf]
    %v182 = vld [vmem:[#allocation7 + $0x11c] sm:$0xf]
    %v183 = vld [vmem:[#allocation7 + $0x120] sm:$0xf]
    %v184 = vld [vmem:[#allocation7 + $0x124] sm:$0xf]
    %v185 = vld [vmem:[#allocation7 + $0x128] sm:$0xf]
    %v186 = vld [vmem:[#allocation7 + $0x12c] sm:$0xf]
    %v187 = vld [vmem:[#allocation7 + $0x130] sm:$0xf]
    %v188 = vld [vmem:[#allocation7 + $0x134] sm:$0xf]
    %v189 = vld [vmem:[#allocation7 + $0x138] sm:$0xf]
    %v190 = vld [vmem:[#allocation7 + $0x13c] sm:$0xf]
    %v191 = vld [vmem:[#allocation7 + $0x140] sm:$0xf]
    %v192 = vld [vmem:[#allocation7 + $0x144] sm:$0xf]
    %v193 = vld [vmem:[#allocation7 + $0x148] sm:$0xf]
    %v194 = vld [vmem:[#allocation7 + $0x14c] sm:$0xf]
    %v195 = vld [vmem:[#allocation7 + $0x150] sm:$0xf]
    %v196 = vld [vmem:[#allocation7 + $0x154] sm:$0xf]
    %v197 = vld [vmem:[#allocation7 + $0x158] sm:$0xf]
    %v198 = vld [vmem:[#allocation7 + $0x15c] sm:$0xf]
    %v199 = vld [vmem:[#allocation7 + $0x160] sm:$0xf]
    %v200 = vld [vmem:[#allocation7 + $0x164] sm:$0xf]
    %v201 = vld [vmem:[#allocation7 + $0x168] sm:$0xf]
    %v202 = vld [vmem:[#allocation7 + $0x16c] sm:$0xf]
    %v203 = vld [vmem:[#allocation7 + $0x170] sm:$0xf]
    %v204 = vld [vmem:[#allocation7 + $0x174] sm:$0xf]
    %v205 = vld [vmem:[#allocation7 + $0x178] sm:$0xf]
    %v206 = vld [vmem:[#allocation7 + $0x17c] sm:$0xf]
    %v207 = vld [vmem:[#allocation7 + $0x180] sm:$0xf]
    %v208 = vld [vmem:[#allocation7 + $0x184] sm:$0xf]
    %v209 = vld [vmem:[#allocation7 + $0x188] sm:$0xf]
    %v210 = vld [vmem:[#allocation7 + $0x18c] sm:$0xf]
    %v211 = vld [vmem:[#allocation7 + $0x190] sm:$0xf]
    %v212 = vld [vmem:[#allocation7 + $0x194] sm:$0xf]
    %v213 = vld [vmem:[#allocation7 + $0x198] sm:$0xf]
    %v214 = vld [vmem:[#allocation7 + $0x19c] sm:$0xf]
    %v215 = vld [vmem:[#allocation7 + $0x1a0] sm:$0xf]
    %v216 = vld [vmem:[#allocation7 + $0x1a4] sm:$0xf]
    %v217 = vld [vmem:[#allocation7 + $0x1a8] sm:$0xf]
    %v218 = vld [vmem:[#allocation7 + $0x1ac] sm:$0xf]
    %v219 = vld [vmem:[#allocation7 + $0x1b0] sm:$0xf]
    %v220 = vld [vmem:[#allocation7 + $0x1b4] sm:$0xf]
    %v221 = vld [vmem:[#allocation7 + $0x1b8] sm:$0xf]
    %v222 = vld [vmem:[#allocation7 + $0x1bc] sm:$0xf]
    %v223 = vld [vmem:[#allocation7 + $0x1c0] sm:$0xf]
    %v224 = vld [vmem:[#allocation7 + $0x1c4] sm:$0xf]
    %v225 = vld [vmem:[#allocation7 + $0x1c8] sm:$0xf]
    %v226 = vld [vmem:[#allocation7 + $0x1cc] sm:$0xf]
    %v227 = vld [vmem:[#allocation7 + $0x1d0] sm:$0xf]
    %v228 = vld [vmem:[#allocation7 + $0x1d4] sm:$0xf]
    %v229 = vld [vmem:[#allocation7 + $0x1d8] sm:$0xf]
    %v230 = vld [vmem:[#allocation7 + $0x1dc] sm:$0xf]
    %v231 = vld [vmem:[#allocation7 + $0x1e0] sm:$0xf]
    %v232 = vld [vmem:[#allocation7 + $0x1e4] sm:$0xf]
    %v233 = vld [vmem:[#allocation7 + $0x1e8] sm:$0xf]
    %v234 = vld [vmem:[#allocation7 + $0x1ec] sm:$0xf]
    %v235 = vld [vmem:[#allocation7 + $0x1f0] sm:$0xf]
    %v236 = vld [vmem:[#allocation7 + $0x1f4] sm:$0xf]
    %v237 = vld [vmem:[#allocation7 + $0x1f8] sm:$0xf]
    %v238 = vld [vmem:[#allocation7 + $0x1fc] sm:$0xf]
    %v239 = vld [vmem:[#allocation7 + $0x200] sm:$0xf]
    %v240 = vld [vmem:[#allocation7 + $0x204] sm:$0xf]
    %v241 = vld [vmem:[#allocation7 + $0x208] sm:$0xf]
    %v242 = vld [vmem:[#allocation7 + $0x20c] sm:$0xf]
    %v243 = vld [vmem:[#allocation7 + $0x210] sm:$0xf]
    %v244 = vld [vmem:[#allocation7 + $0x214] sm:$0xf]
    %v245 = vld [vmem:[#allocation7 + $0x218] sm:$0xf]
    %v246 = vld [vmem:[#allocation7 + $0x21c] sm:$0xf]
    %v247 = vld [vmem:[#allocation7 + $0x220] sm:$0xf]
    %v248 = vld [vmem:[#allocation7 + $0x224] sm:$0xf]
    %v249 = vld [vmem:[#allocation7 + $0x228] sm:$0xf]
    %v250 = vld [vmem:[#allocation7 + $0x22c] sm:$0xf]
    %v251 = vld [vmem:[#allocation7 + $0x230] sm:$0xf]
    %v252 = vld [vmem:[#allocation7 + $0x234] sm:$0xf]
    %v253 = vld [vmem:[#allocation7 + $0x238] sm:$0xf]
    %v254 = vld [vmem:[#allocation7 + $0x23c] sm:$0xf]
    %v255 = vld [vmem:[#allocation7 + $0x240] sm:$0xf]
    %v256 = vld [vmem:[#allocation7 + $0x244] sm:$0xf]
    %v257 = vld [vmem:[#allocation7 + $0x248] sm:$0xf]
    %v258 = vld [vmem:[#allocation7 + $0x24c] sm:$0xf]
    %v259 = vld [vmem:[#allocation7 + $0x250] sm:$0xf]
    %v260 = vld [vmem:[#allocation7 + $0x254] sm:$0xf]
    %v261 = vld [vmem:[#allocation7 + $0x258] sm:$0xf]
    %v262 = vld [vmem:[#allocation7 + $0x25c] sm:$0xf]
    %v263 = vld [vmem:[#allocation7 + $0x260] sm:$0xf]
    %v264 = vld [vmem:[#allocation7 + $0x264] sm:$0xf]
    %v265 = vld [vmem:[#allocation7 + $0x268] sm:$0xf]
    %v266 = vld [vmem:[#allocation7 + $0x26c] sm:$0xf]
    %v267 = vld [vmem:[#allocation7 + $0x270] sm:$0xf]
    %v268 = vld [vmem:[#allocation7 + $0x274] sm:$0xf]
    %v269 = vld [vmem:[#allocation7 + $0x278] sm:$0xf]
    %v270 = vld [vmem:[#allocation7 + $0x27c] sm:$0xf]
    %v271 = vld [vmem:[#allocation7 + $0x280] sm:$0xf]
    %v272 = vld [vmem:[#allocation7 + $0x284] sm:$0xf]
    %v273 = vld [vmem:[#allocation7 + $0x288] sm:$0xf]
    %v274 = vld [vmem:[#allocation7 + $0x28c] sm:$0xf]
    %v275 = vld [vmem:[#allocation7 + $0x290] sm:$0xf]
    %v276 = vld [vmem:[#allocation7 + $0x294] sm:$0xf]
    %v277 = vld [vmem:[#allocation7 + $0x298] sm:$0xf]
    %v278 = vld [vmem:[#allocation7 + $0x29c] sm:$0xf]
    %v279 = vld [vmem:[#allocation7 + $0x2a0] sm:$0xf]
    %v280 = vld [vmem:[#allocation7 + $0x2a4] sm:$0xf]
    %v281 = vld [vmem:[#allocation7 + $0x2a8] sm:$0xf]
    %v282 = vld [vmem:[#allocation7 + $0x2ac] sm:$0xf]
    %v283 = vld [vmem:[#allocation7 + $0x2b0] sm:$0xf]
    %v284 = vld [vmem:[#allocation7 + $0x2b4] sm:$0xf]
    %v285 = vld [vmem:[#allocation7 + $0x2b8] sm:$0xf]
    %v286 = vld [vmem:[#allocation7 + $0x2bc] sm:$0xf]
    %v287 = vld [vmem:[#allocation7 + $0x2c0] sm:$0xf]
    %v288 = vld [vmem:[#allocation7 + $0x2c4] sm:$0xf]
    %v289 = vld [vmem:[#allocation7 + $0x2c8] sm:$0xf]
    %v290 = vld [vmem:[#allocation7 + $0x2cc] sm:$0xf]
    %v291 = vld [vmem:[#allocation7 + $0x2d0] sm:$0xf]
    %v292 = vld [vmem:[#allocation7 + $0x2d4] sm:$0xf]
    %v293 = vld [vmem:[#allocation7 + $0x2d8] sm:$0xf]
    %v294 = vld [vmem:[#allocation7 + $0x2dc] sm:$0xf]
    %v295 = vld [vmem:[#allocation7 + $0x2e0] sm:$0xf]
    %v296 = vld [vmem:[#allocation7 + $0x2e4] sm:$0xf]
    %v297 = vld [vmem:[#allocation7 + $0x2e8] sm:$0xf]
    %v298 = vld [vmem:[#allocation7 + $0x2ec] sm:$0xf]
    %v299 = vld [vmem:[#allocation7 + $0x2f0] sm:$0xf]
    %v300 = vld [vmem:[#allocation7 + $0x2f4] sm:$0xf]
    %v301 = vld [vmem:[#allocation7 + $0x2f8] sm:$0xf]
    %v302 = vld [vmem:[#allocation7 + $0x2fc] sm:$0xf]
    %v327 = vunpack.c.l.b16 %v87
    %v328 = vunpack.c.h.b16 %v87
    %v329 = vunpack.c.l.b16 %v88
    %v330 = vunpack.c.h.b16 %v88
    %v331 = vunpack.c.l.b16 %v89
    %v332 = vunpack.c.h.b16 %v89
    %v333 = vunpack.c.l.b16 %v90
    %v334 = vunpack.c.h.b16 %v90
    %v335 = vunpack.c.l.b16 %v91
    %v336 = vunpack.c.h.b16 %v91
    %v337 = vunpack.c.l.b16 %v92
    %v338 = vunpack.c.h.b16 %v92
    %v339 = vunpack.c.l.b16 %v93
    %v340 = vunpack.c.h.b16 %v93
    %v341 = vunpack.c.l.b16 %v94
    %v342 = vunpack.c.h.b16 %v94
    %v343 = vunpack.c.l.b16 %v95
    %v344 = vunpack.c.h.b16 %v95
    %v345 = vunpack.c.l.b16 %v96
    %v346 = vunpack.c.h.b16 %v96
    %v347 = vunpack.c.l.b16 %v97
    %v348 = vunpack.c.h.b16 %v97
    %v349 = vunpack.c.l.b16 %v98
    %v350 = vunpack.c.h.b16 %v98
    %v351 = vunpack.c.l.b16 %v99
    %v352 = vunpack.c.h.b16 %v99
    %v353 = vunpack.c.l.b16 %v100
    %v354 = vunpack.c.h.b16 %v100
    %v355 = vunpack.c.l.b16 %v101
    %v356 = vunpack.c.h.b16 %v101
    %v357 = vunpack.c.l.b16 %v102
    %v358 = vunpack.c.h.b16 %v102
    %v359 = vunpack.c.l.b16 %v103
    %v360 = vunpack.c.h.b16 %v103
    %v361 = vunpack.c.l.b16 %v104
    %v362 = vunpack.c.h.b16 %v104
    %v363 = vunpack.c.l.b16 %v105
    %v364 = vunpack.c.h.b16 %v105
    %v365 = vunpack.c.l.b16 %v106
    %v366 = vunpack.c.h.b16 %v106
    %v367 = vunpack.c.l.b16 %v107
    %v368 = vunpack.c.h.b16 %v107
    %v369 = vunpack.c.l.b16 %v108
    %v370 = vunpack.c.h.b16 %v108
    %v371 = vunpack.c.l.b16 %v109
    %v372 = vunpack.c.h.b16 %v109
    %v373 = vunpack.c.l.b16 %v110
    %v374 = vunpack.c.h.b16 %v110
    %v375 = vpack.c.b16 %v339, %v327
    %v376 = vpack.c.b16 %v340, %v328
    %v377 = vpack.c.b16 %v341, %v329
    %v378 = vpack.c.b16 %v342, %v330
    %v379 = vpack.c.b16 %v343, %v331
    %v380 = vpack.c.b16 %v344, %v332
    %v381 = vpack.c.b16 %v345, %v333
    %v382 = vpack.c.b16 %v346, %v334
    %v383 = vpack.c.b16 %v347, %v335
    %v384 = vpack.c.b16 %v348, %v336
    %v385 = vpack.c.b16 %v349, %v337
    %v386 = vpack.c.b16 %v350, %v338
    %v387 = vpack.c.b16 %v363, %v351
    %v388 = vpack.c.b16 %v364, %v352
    %v389 = vpack.c.b16 %v365, %v353
    %v390 = vpack.c.b16 %v366, %v354
    %v391 = vpack.c.b16 %v367, %v355
    %v392 = vpack.c.b16 %v368, %v356
    %v393 = vpack.c.b16 %v369, %v357
    %v394 = vpack.c.b16 %v370, %v358
    %v395 = vpack.c.b16 %v371, %v359
    %v396 = vpack.c.b16 %v372, %v360
    %v397 = vpack.c.b16 %v373, %v361
    %v398 = vpack.c.b16 %v374, %v362
    %v615 = vunpack.c.l.b16 %v111
    %v616 = vunpack.c.l.b16 %v112
    %v617 = vunpack.c.l.b16 %v113
    %v618 = vunpack.c.l.b16 %v114
    %v619 = vunpack.c.l.b16 %v115
    %v620 = vunpack.c.l.b16 %v116
    %v621 = vunpack.c.l.b16 %v117
    %v622 = vunpack.c.l.b16 %v118
    %v623 = vunpack.c.l.b16 %v119
    %v624 = vunpack.c.l.b16 %v120
    %v625 = vunpack.c.l.b16 %v121
    %v626 = vunpack.c.l.b16 %v122
    %v627 = vunpack.c.l.b16 %v123
    %v628 = vunpack.c.l.b16 %v124
    %v629 = vunpack.c.l.b16 %v125
    %v630 = vunpack.c.l.b16 %v126
    %v631 = vunpack.c.l.b16 %v127
    %v632 = vunpack.c.l.b16 %v128
    %v633 = vunpack.c.l.b16 %v129
    %v634 = vunpack.c.l.b16 %v130
    %v635 = vunpack.c.l.b16 %v131
    %v636 = vunpack.c.l.b16 %v132
    %v637 = vunpack.c.l.b16 %v133
    %v638 = vunpack.c.l.b16 %v134
    %v639 = vunpack.c.l.b16 %v135
    %v640 = vunpack.c.l.b16 %v136
    %v641 = vunpack.c.l.b16 %v137
    %v642 = vunpack.c.l.b16 %v138
    %v643 = vunpack.c.l.b16 %v139
    %v644 = vunpack.c.l.b16 %v140
    %v645 = vunpack.c.l.b16 %v141
    %v646 = vunpack.c.l.b16 %v142
    %v647 = vunpack.c.l.b16 %v143
    %v648 = vunpack.c.l.b16 %v144
    %v649 = vunpack.c.l.b16 %v145
    %v650 = vunpack.c.l.b16 %v146
    %v651 = vunpack.c.l.b16 %v147
    %v652 = vunpack.c.l.b16 %v148
    %v653 = vunpack.c.l.b16 %v149
    %v654 = vunpack.c.l.b16 %v150
    %v655 = vunpack.c.l.b16 %v151
    %v656 = vunpack.c.l.b16 %v152
    %v657 = vunpack.c.l.b16 %v153
    %v658 = vunpack.c.l.b16 %v154
    %v659 = vunpack.c.l.b16 %v155
    %v660 = vunpack.c.l.b16 %v156
    %v661 = vunpack.c.l.b16 %v157
    %v662 = vunpack.c.l.b16 %v158
    %v663 = vunpack.c.l.b16 %v159
    %v664 = vunpack.c.l.b16 %v160
    %v665 = vunpack.c.l.b16 %v161
    %v666 = vunpack.c.l.b16 %v162
    %v667 = vunpack.c.l.b16 %v163
    %v668 = vunpack.c.l.b16 %v164
    %v669 = vunpack.c.l.b16 %v165
    %v670 = vunpack.c.l.b16 %v166
    %v671 = vunpack.c.l.b16 %v167
    %v672 = vunpack.c.l.b16 %v168
    %v673 = vunpack.c.l.b16 %v169
    %v674 = vunpack.c.l.b16 %v170
    %v675 = vunpack.c.l.b16 %v171
    %v676 = vunpack.c.l.b16 %v172
    %v677 = vunpack.c.l.b16 %v173
    %v678 = vunpack.c.l.b16 %v174
    %v679 = vunpack.c.l.b16 %v175
    %v680 = vunpack.c.l.b16 %v176
    %v681 = vunpack.c.l.b16 %v177
    %v682 = vunpack.c.l.b16 %v178
    %v683 = vunpack.c.l.b16 %v179
    %v684 = vunpack.c.l.b16 %v180
    %v685 = vunpack.c.l.b16 %v181
    %v686 = vunpack.c.l.b16 %v182
    %v687 = vunpack.c.l.b16 %v183
    %v688 = vunpack.c.l.b16 %v184
    %v689 = vunpack.c.l.b16 %v185
    %v690 = vunpack.c.l.b16 %v186
    %v691 = vunpack.c.l.b16 %v187
    %v692 = vunpack.c.l.b16 %v188
    %v693 = vunpack.c.l.b16 %v189
    %v694 = vunpack.c.l.b16 %v190
    %v695 = vunpack.c.l.b16 %v191
    %v696 = vunpack.c.l.b16 %v192
    %v697 = vunpack.c.l.b16 %v193
    %v698 = vunpack.c.l.b16 %v194
    %v699 = vunpack.c.l.b16 %v195
    %v700 = vunpack.c.l.b16 %v196
    %v701 = vunpack.c.l.b16 %v197
    %v702 = vunpack.c.l.b16 %v198
    %v703 = vunpack.c.l.b16 %v199
    %v704 = vunpack.c.l.b16 %v200
    %v705 = vunpack.c.l.b16 %v201
    %v706 = vunpack.c.l.b16 %v202
    %v707 = vunpack.c.l.b16 %v203
    %v708 = vunpack.c.l.b16 %v204
    %v709 = vunpack.c.l.b16 %v205
    %v710 = vunpack.c.l.b16 %v206
    %v711 = vunpack.c.l.b16 %v207
    %v712 = vunpack.c.l.b16 %v208
    %v713 = vunpack.c.l.b16 %v209
    %v714 = vunpack.c.l.b16 %v210
    %v715 = vunpack.c.l.b16 %v211
    %v716 = vunpack.c.l.b16 %v212
    %v717 = vunpack.c.l.b16 %v213
    %v718 = vunpack.c.l.b16 %v214
    %v719 = vunpack.c.l.b16 %v215
    %v720 = vunpack.c.l.b16 %v216
    %v721 = vunpack.c.l.b16 %v217
    %v722 = vunpack.c.l.b16 %v218
    %v723 = vunpack.c.l.b16 %v219
    %v724 = vunpack.c.l.b16 %v220
    %v725 = vunpack.c.l.b16 %v221
    %v726 = vunpack.c.l.b16 %v222
    %v727 = vunpack.c.l.b16 %v223
    %v728 = vunpack.c.l.b16 %v224
    %v729 = vunpack.c.l.b16 %v225
    %v730 = vunpack.c.l.b16 %v226
    %v731 = vunpack.c.l.b16 %v227
    %v732 = vunpack.c.l.b16 %v228
    %v733 = vunpack.c.l.b16 %v229
    %v734 = vunpack.c.l.b16 %v230
    %v735 = vunpack.c.l.b16 %v231
    %v736 = vunpack.c.l.b16 %v232
    %v737 = vunpack.c.l.b16 %v233
    %v738 = vunpack.c.l.b16 %v234
    %v739 = vunpack.c.l.b16 %v235
    %v740 = vunpack.c.l.b16 %v236
    %v741 = vunpack.c.l.b16 %v237
    %v742 = vunpack.c.l.b16 %v238
    %v743 = vunpack.c.l.b16 %v239
    %v744 = vunpack.c.l.b16 %v240
    %v745 = vunpack.c.l.b16 %v241
    %v746 = vunpack.c.l.b16 %v242
    %v747 = vunpack.c.l.b16 %v243
    %v748 = vunpack.c.l.b16 %v244
    %v749 = vunpack.c.l.b16 %v245
    %v750 = vunpack.c.l.b16 %v246
    %v751 = vunpack.c.l.b16 %v247
    %v752 = vunpack.c.l.b16 %v248
    %v753 = vunpack.c.l.b16 %v249
    %v754 = vunpack.c.l.b16 %v250
    %v755 = vunpack.c.l.b16 %v251
    %v756 = vunpack.c.l.b16 %v252
    %v757 = vunpack.c.l.b16 %v253
    %v758 = vunpack.c.l.b16 %v254
    %v759 = vunpack.c.l.b16 %v255
    %v760 = vunpack.c.l.b16 %v256
    %v761 = vunpack.c.l.b16 %v257
    %v762 = vunpack.c.l.b16 %v258
    %v763 = vunpack.c.l.b16 %v259
    %v764 = vunpack.c.l.b16 %v260
    %v765 = vunpack.c.l.b16 %v261
    %v766 = vunpack.c.l.b16 %v262
    %v767 = vunpack.c.l.b16 %v263
    %v768 = vunpack.c.l.b16 %v264
    %v769 = vunpack.c.l.b16 %v265
    %v770 = vunpack.c.l.b16 %v266
    %v771 = vunpack.c.l.b16 %v267
    %v772 = vunpack.c.l.b16 %v268
    %v773 = vunpack.c.l.b16 %v269
    %v774 = vunpack.c.l.b16 %v270
    %v775 = vunpack.c.l.b16 %v271
    %v776 = vunpack.c.l.b16 %v272
    %v777 = vunpack.c.l.b16 %v273
    %v778 = vunpack.c.l.b16 %v274
    %v779 = vunpack.c.l.b16 %v275
    %v780 = vunpack.c.l.b16 %v276
    %v781 = vunpack.c.l.b16 %v277
    %v782 = vunpack.c.l.b16 %v278
    %v783 = vunpack.c.l.b16 %v279
    %v784 = vunpack.c.l.b16 %v280
    %v785 = vunpack.c.l.b16 %v281
    %v786 = vunpack.c.l.b16 %v282
    %v787 = vunpack.c.l.b16 %v283
    %v788 = vunpack.c.l.b16 %v284
    %v789 = vunpack.c.l.b16 %v285
    %v790 = vunpack.c.l.b16 %v286
    %v791 = vunpack.c.l.b16 %v287
    %v792 = vunpack.c.l.b16 %v288
    %v793 = vunpack.c.l.b16 %v289
    %v794 = vunpack.c.l.b16 %v290
    %v795 = vunpack.c.l.b16 %v291
    %v796 = vunpack.c.l.b16 %v292
    %v797 = vunpack.c.l.b16 %v293
    %v798 = vunpack.c.l.b16 %v294
    %v799 = vunpack.c.l.b16 %v295
    %v800 = vunpack.c.l.b16 %v296
    %v801 = vunpack.c.l.b16 %v297
    %v802 = vunpack.c.l.b16 %v298
    %v803 = vunpack.c.l.b16 %v299
    %v804 = vunpack.c.l.b16 %v300
    %v805 = vunpack.c.l.b16 %v301
    %v806 = vunpack.c.l.b16 %v302
    %v807 = vpack.c.b16 %v616, %v615
    %v808 = vpack.c.b16 %v618, %v617
    %v809 = vpack.c.b16 %v620, %v619
    %v810 = vpack.c.b16 %v622, %v621
    %v811 = vpack.c.b16 %v624, %v623
    %v812 = vpack.c.b16 %v626, %v625
    %v813 = vpack.c.b16 %v628, %v627
    %v814 = vpack.c.b16 %v630, %v629
    %v815 = vpack.c.b16 %v632, %v631
    %v816 = vpack.c.b16 %v634, %v633
    %v817 = vpack.c.b16 %v636, %v635
    %v818 = vpack.c.b16 %v638, %v637
    %v819 = vpack.c.b16 %v640, %v639
    %v820 = vpack.c.b16 %v642, %v641
    %v821 = vpack.c.b16 %v644, %v643
    %v822 = vpack.c.b16 %v646, %v645
    %v823 = vpack.c.b16 %v648, %v647
    %v824 = vpack.c.b16 %v650, %v649
    %v825 = vpack.c.b16 %v652, %v651
    %v826 = vpack.c.b16 %v654, %v653
    %v827 = vpack.c.b16 %v656, %v655
    %v828 = vpack.c.b16 %v658, %v657
    %v829 = vpack.c.b16 %v660, %v659
    %v830 = vpack.c.b16 %v662, %v661
    %v831 = vpack.c.b16 %v664, %v663
    %v832 = vpack.c.b16 %v666, %v665
    %v833 = vpack.c.b16 %v668, %v667
    %v834 = vpack.c.b16 %v670, %v669
    %v835 = vpack.c.b16 %v672, %v671
    %v836 = vpack.c.b16 %v674, %v673
    %v837 = vpack.c.b16 %v676, %v675
    %v838 = vpack.c.b16 %v678, %v677
    %v839 = vpack.c.b16 %v680, %v679
    %v840 = vpack.c.b16 %v682, %v681
    %v841 = vpack.c.b16 %v684, %v683
    %v842 = vpack.c.b16 %v686, %v685
    %v843 = vpack.c.b16 %v688, %v687
    %v844 = vpack.c.b16 %v690, %v689
    %v845 = vpack.c.b16 %v692, %v691
    %v846 = vpack.c.b16 %v694, %v693
    %v847 = vpack.c.b16 %v696, %v695
    %v848 = vpack.c.b16 %v698, %v697
    %v849 = vpack.c.b16 %v700, %v699
    %v850 = vpack.c.b16 %v702, %v701
    %v851 = vpack.c.b16 %v704, %v703
    %v852 = vpack.c.b16 %v706, %v705
    %v853 = vpack.c.b16 %v708, %v707
    %v854 = vpack.c.b16 %v710, %v709
    %v855 = vpack.c.b16 %v712, %v711
    %v856 = vpack.c.b16 %v714, %v713
    %v857 = vpack.c.b16 %v716, %v715
    %v858 = vpack.c.b16 %v718, %v717
    %v859 = vpack.c.b16 %v720, %v719
    %v860 = vpack.c.b16 %v722, %v721
    %v861 = vpack.c.b16 %v724, %v723
    %v862 = vpack.c.b16 %v726, %v725
    %v863 = vpack.c.b16 %v728, %v727
    %v864 = vpack.c.b16 %v730, %v729
    %v865 = vpack.c.b16 %v732, %v731
    %v866 = vpack.c.b16 %v734, %v733
    %v867 = vpack.c.b16 %v736, %v735
    %v868 = vpack.c.b16 %v738, %v737
    %v869 = vpack.c.b16 %v740, %v739
    %v870 = vpack.c.b16 %v742, %v741
    %v871 = vpack.c.b16 %v744, %v743
    %v872 = vpack.c.b16 %v746, %v745
    %v873 = vpack.c.b16 %v748, %v747
    %v874 = vpack.c.b16 %v750, %v749
    %v875 = vpack.c.b16 %v752, %v751
    %v876 = vpack.c.b16 %v754, %v753
    %v877 = vpack.c.b16 %v756, %v755
    %v878 = vpack.c.b16 %v758, %v757
    %v879 = vpack.c.b16 %v760, %v759
    %v880 = vpack.c.b16 %v762, %v761
    %v881 = vpack.c.b16 %v764, %v763
    %v882 = vpack.c.b16 %v766, %v765
    %v883 = vpack.c.b16 %v768, %v767
    %v884 = vpack.c.b16 %v770, %v769
    %v885 = vpack.c.b16 %v772, %v771
    %v886 = vpack.c.b16 %v774, %v773
    %v887 = vpack.c.b16 %v776, %v775
    %v888 = vpack.c.b16 %v778, %v777
    %v889 = vpack.c.b16 %v780, %v779
    %v890 = vpack.c.b16 %v782, %v781
    %v891 = vpack.c.b16 %v784, %v783
    %v892 = vpack.c.b16 %v786, %v785
    %v893 = vpack.c.b16 %v788, %v787
    %v894 = vpack.c.b16 %v790, %v789
    %v895 = vpack.c.b16 %v792, %v791
    %v896 = vpack.c.b16 %v794, %v793
    %v897 = vpack.c.b16 %v796, %v795
    %v898 = vpack.c.b16 %v798, %v797
    %v899 = vpack.c.b16 %v800, %v799
    %v900 = vpack.c.b16 %v802, %v801
    %v901 = vpack.c.b16 %v804, %v803
    %v902 = vpack.c.b16 %v806, %v805
    %999 = vmatpush.bf16.msra.mxu0 %v814
    %1000 = vmatpush.bf16.msra.mxu0 %v813
    %1001 = vmatpush.bf16.msra.mxu0 %v812
    %1002 = vmatpush.bf16.msra.mxu0 %v811
    %1003 = vmatpush.bf16.msra.mxu0 %v810
    %1004 = vmatpush.bf16.msra.mxu0 %v809
    %1005 = vmatpush.bf16.msra.mxu0 %v808
    %1006 = vmatpush.bf16.msra.mxu0 %v807
    %1007 = vmatmul.bf16.gmra.mxu0 %v375
    %v1008 = vpop.f32.mrf.mxu0
    %v1009 = vadd.f32 0.0, %v1008
    %v1010 = vpop.f32.mrf.mxu0
    %v1011 = vadd.f32 0.0, %v1010
    %1012 = vmatmul.bf16.gmra.mxu0 %v387
    %v1013 = vpop.f32.mrf.mxu0
    %v1014 = vadd.f32 0.0, %v1013
    %v1015 = vpop.f32.mrf.mxu0
    %v1016 = vadd.f32 0.0, %v1015
    %1017 = vdwg.mxu0
    %1018 = vmatpush.bf16.msra.mxu0 %v822
    %1019 = vmatpush.bf16.msra.mxu0 %v821
    %1020 = vmatpush.bf16.msra.mxu0 %v820
    %1021 = vmatpush.bf16.msra.mxu0 %v819
    %1022 = vmatpush.bf16.msra.mxu0 %v818
    %1023 = vmatpush.bf16.msra.mxu0 %v817
    %1024 = vmatpush.bf16.msra.mxu0 %v816
    %1025 = vmatpush.bf16.msra.mxu0 %v815
    %1026 = vmatmul.bf16.gmra.mxu0 %v376
    %v1027 = vpop.f32.mrf.mxu0
    %v1028 = vadd.f32 %v1009, %v1027
    %v1029 = vpop.f32.mrf.mxu0
    %v1030 = vadd.f32 %v1011, %v1029
    %1031 = vmatmul.bf16.gmra.mxu0 %v388
    %v1032 = vpop.f32.mrf.mxu0
    %v1033 = vadd.f32 %v1014, %v1032
    %v1034 = vpop.f32.mrf.mxu0
    %v1035 = vadd.f32 %v1016, %v1034
    %1036 = vdwg.mxu0
    %1037 = vmatpush.bf16.msra.mxu0 %v830
    %1038 = vmatpush.bf16.msra.mxu0 %v829
    %1039 = vmatpush.bf16.msra.mxu0 %v828
    %1040 = vmatpush.bf16.msra.mxu0 %v827
    %1041 = vmatpush.bf16.msra.mxu0 %v826
    %1042 = vmatpush.bf16.msra.mxu0 %v825
    %1043 = vmatpush.bf16.msra.mxu0 %v824
    %1044 = vmatpush.bf16.msra.mxu0 %v823
    %1045 = vmatmul.bf16.gmra.mxu0 %v377
    %v1046 = vpop.f32.mrf.mxu0
    %v1047 = vadd.f32 %v1028, %v1046
    %v1048 = vpop.f32.mrf.mxu0
    %v1049 = vadd.f32 %v1030, %v1048
    %1050 = vmatmul.bf16.gmra.mxu0 %v389
    %v1051 = vpop.f32.mrf.mxu0
    %v1052 = vadd.f32 %v1033, %v1051
    %v1053 = vpop.f32.mrf.mxu0
    %v1054 = vadd.f32 %v1035, %v1053
    %1055 = vdwg.mxu0
    %1056 = vmatpush.bf16.msra.mxu0 %v838
    %1057 = vmatpush.bf16.msra.mxu0 %v837
    %1058 = vmatpush.bf16.msra.mxu0 %v836
    %1059 = vmatpush.bf16.msra.mxu0 %v835
    %1060 = vmatpush.bf16.msra.mxu0 %v834
    %1061 = vmatpush.bf16.msra.mxu0 %v833
    %1062 = vmatpush.bf16.msra.mxu0 %v832
    %1063 = vmatpush.bf16.msra.mxu0 %v831
    %1064 = vmatmul.bf16.gmra.mxu0 %v378
    %v1065 = vpop.f32.mrf.mxu0
    %v1066 = vadd.f32 %v1047, %v1065
    %v1067 = vpop.f32.mrf.mxu0
    %v1068 = vadd.f32 %v1049, %v1067
    %1069 = vmatmul.bf16.gmra.mxu0 %v390
    %v1070 = vpop.f32.mrf.mxu0
    %v1071 = vadd.f32 %v1052, %v1070
    %v1072 = vpop.f32.mrf.mxu0
    %v1073 = vadd.f32 %v1054, %v1072
    %1074 = vdwg.mxu0
    %1075 = vmatpush.bf16.msra.mxu0 %v846
    %1076 = vmatpush.bf16.msra.mxu0 %v845
    %1077 = vmatpush.bf16.msra.mxu0 %v844
    %1078 = vmatpush.bf16.msra.mxu0 %v843
    %1079 = vmatpush.bf16.msra.mxu0 %v842
    %1080 = vmatpush.bf16.msra.mxu0 %v841
    %1081 = vmatpush.bf16.msra.mxu0 %v840
    %1082 = vmatpush.bf16.msra.mxu0 %v839
    %1083 = vmatmul.bf16.gmra.mxu0 %v379
    %v1084 = vpop.f32.mrf.mxu0
    %v1085 = vadd.f32 %v1066, %v1084
    %v1086 = vpop.f32.mrf.mxu0
    %v1087 = vadd.f32 %v1068, %v1086
    %1088 = vmatmul.bf16.gmra.mxu0 %v391
    %v1089 = vpop.f32.mrf.mxu0
    %v1090 = vadd.f32 %v1071, %v1089
    %v1091 = vpop.f32.mrf.mxu0
    %v1092 = vadd.f32 %v1073, %v1091
    %1093 = vdwg.mxu0
    %1094 = vmatpush.bf16.msra.mxu0 %v854
    %1095 = vmatpush.bf16.msra.mxu0 %v853
    %1096 = vmatpush.bf16.msra.mxu0 %v852
    %1097 = vmatpush.bf16.msra.mxu0 %v851
    %1098 = vmatpush.bf16.msra.mxu0 %v850
    %1099 = vmatpush.bf16.msra.mxu0 %v849
    %1100 = vmatpush.bf16.msra.mxu0 %v848
    %1101 = vmatpush.bf16.msra.mxu0 %v847
    %1102 = vmatmul.bf16.gmra.mxu0 %v380
    %v1103 = vpop.f32.mrf.mxu0
    %v1104 = vadd.f32 %v1085, %v1103
    %v1105 = vpop.f32.mrf.mxu0
    %v1106 = vadd.f32 %v1087, %v1105
    %1107 = vmatmul.bf16.gmra.mxu0 %v392
    %v1108 = vpop.f32.mrf.mxu0
    %v1109 = vadd.f32 %v1090, %v1108
    %v1110 = vpop.f32.mrf.mxu0
    %v1111 = vadd.f32 %v1092, %v1110
    %1112 = vdwg.mxu0
    %1113 = vmatpush.bf16.msra.mxu0 %v862
    %1114 = vmatpush.bf16.msra.mxu0 %v861
    %1115 = vmatpush.bf16.msra.mxu0 %v860
    %1116 = vmatpush.bf16.msra.mxu0 %v859
    %1117 = vmatpush.bf16.msra.mxu0 %v858
    %1118 = vmatpush.bf16.msra.mxu0 %v857
    %1119 = vmatpush.bf16.msra.mxu0 %v856
    %1120 = vmatpush.bf16.msra.mxu0 %v855
    %1121 = vmatmul.bf16.gmra.mxu0 %v381
    %v1122 = vpop.f32.mrf.mxu0
    %v1123 = vadd.f32 %v1104, %v1122
    %v1124 = vpop.f32.mrf.mxu0
    %v1125 = vadd.f32 %v1106, %v1124
    %1126 = vmatmul.bf16.gmra.mxu0 %v393
    %v1127 = vpop.f32.mrf.mxu0
    %v1128 = vadd.f32 %v1109, %v1127
    %v1129 = vpop.f32.mrf.mxu0
    %v1130 = vadd.f32 %v1111, %v1129
    %1131 = vdwg.mxu0
    %1132 = vmatpush.bf16.msra.mxu0 %v870
    %1133 = vmatpush.bf16.msra.mxu0 %v869
    %1134 = vmatpush.bf16.msra.mxu0 %v868
    %1135 = vmatpush.bf16.msra.mxu0 %v867
    %1136 = vmatpush.bf16.msra.mxu0 %v866
    %1137 = vmatpush.bf16.msra.mxu0 %v865
    %1138 = vmatpush.bf16.msra.mxu0 %v864
    %1139 = vmatpush.bf16.msra.mxu0 %v863
    %1140 = vmatmul.bf16.gmra.mxu0 %v382
    %v1141 = vpop.f32.mrf.mxu0
    %v1142 = vadd.f32 %v1123, %v1141
    %v1143 = vpop.f32.mrf.mxu0
    %v1144 = vadd.f32 %v1125, %v1143
    %1145 = vmatmul.bf16.gmra.mxu0 %v394
    %v1146 = vpop.f32.mrf.mxu0
    %v1147 = vadd.f32 %v1128, %v1146
    %v1148 = vpop.f32.mrf.mxu0
    %v1149 = vadd.f32 %v1130, %v1148
    %1150 = vdwg.mxu0
    %1151 = vmatpush.bf16.msra.mxu0 %v878
    %1152 = vmatpush.bf16.msra.mxu0 %v877
    %1153 = vmatpush.bf16.msra.mxu0 %v876
    %1154 = vmatpush.bf16.msra.mxu0 %v875
    %1155 = vmatpush.bf16.msra.mxu0 %v874
    %1156 = vmatpush.bf16.msra.mxu0 %v873
    %1157 = vmatpush.bf16.msra.mxu0 %v872
    %1158 = vmatpush.bf16.msra.mxu0 %v871
    %1159 = vmatmul.bf16.gmra.mxu0 %v383
    %v1160 = vpop.f32.mrf.mxu0
    %v1161 = vadd.f32 %v1142, %v1160
    %v1162 = vpop.f32.mrf.mxu0
    %v1163 = vadd.f32 %v1144, %v1162
    %1164 = vmatmul.bf16.gmra.mxu0 %v395
    %v1165 = vpop.f32.mrf.mxu0
    %v1166 = vadd.f32 %v1147, %v1165
    %v1167 = vpop.f32.mrf.mxu0
    %v1168 = vadd.f32 %v1149, %v1167
    %1169 = vdwg.mxu0
    %1170 = vmatpush.bf16.msra.mxu0 %v886
    %1171 = vmatpush.bf16.msra.mxu0 %v885
    %1172 = vmatpush.bf16.msra.mxu0 %v884
    %1173 = vmatpush.bf16.msra.mxu0 %v883
    %1174 = vmatpush.bf16.msra.mxu0 %v882
    %1175 = vmatpush.bf16.msra.mxu0 %v881
    %1176 = vmatpush.bf16.msra.mxu0 %v880
    %1177 = vmatpush.bf16.msra.mxu0 %v879
    %1178 = vmatmul.bf16.gmra.mxu0 %v384
    %v1179 = vpop.f32.mrf.mxu0
    %v1180 = vadd.f32 %v1161, %v1179
    %v1181 = vpop.f32.mrf.mxu0
    %v1182 = vadd.f32 %v1163, %v1181
    %1183 = vmatmul.bf16.gmra.mxu0 %v396
    %v1184 = vpop.f32.mrf.mxu0
    %v1185 = vadd.f32 %v1166, %v1184
    %v1186 = vpop.f32.mrf.mxu0
    %v1187 = vadd.f32 %v1168, %v1186
    %1188 = vdwg.mxu0
    %1189 = vmatpush.bf16.msra.mxu0 %v894
    %1190 = vmatpush.bf16.msra.mxu0 %v893
    %1191 = vmatpush.bf16.msra.mxu0 %v892
    %1192 = vmatpush.bf16.msra.mxu0 %v891
    %1193 = vmatpush.bf16.msra.mxu0 %v890
    %1194 = vmatpush.bf16.msra.mxu0 %v889
    %1195 = vmatpush.bf16.msra.mxu0 %v888
    %1196 = vmatpush.bf16.msra.mxu0 %v887
    %1197 = vmatmul.bf16.gmra.mxu0 %v385
    %v1198 = vpop.f32.mrf.mxu0
    %v1199 = vadd.f32 %v1180, %v1198
    %v1200 = vpop.f32.mrf.mxu0
    %v1201 = vadd.f32 %v1182, %v1200
    %1202 = vmatmul.bf16.gmra.mxu0 %v397
    %v1203 = vpop.f32.mrf.mxu0
    %v1204 = vadd.f32 %v1185, %v1203
    %v1205 = vpop.f32.mrf.mxu0
    %v1206 = vadd.f32 %v1187, %v1205
    %1207 = vdwg.mxu0
    %1208 = vmatpush.bf16.msra.mxu0 %v902
    %1209 = vmatpush.bf16.msra.mxu0 %v901
    %1210 = vmatpush.bf16.msra.mxu0 %v900
    %1211 = vmatpush.bf16.msra.mxu0 %v899
    %1212 = vmatpush.bf16.msra.mxu0 %v898
    %1213 = vmatpush.bf16.msra.mxu0 %v897
    %1214 = vmatpush.bf16.msra.mxu0 %v896
    %1215 = vmatpush.bf16.msra.mxu0 %v895
    %1216 = vmatmul.bf16.gmra.mxu0 %v386
    %v1217 = vpop.f32.mrf.mxu0
    %v1218 = vadd.f32 %v1199, %v1217
    %v1219 = vpop.f32.mrf.mxu0
    %v1220 = vadd.f32 %v1201, %v1219
    %1221 = vmatmul.bf16.gmra.mxu0 %v398
    %v1222 = vpop.f32.mrf.mxu0
    %v1223 = vadd.f32 %v1204, %v1222
    %v1224 = vpop.f32.mrf.mxu0
    %v1225 = vadd.f32 %v1206, %v1224
    %1226 = vdwg.mxu0
    %v1227 = vld [vmem:[#allocation2] sm:$0xff]
    %v1228 = vld [vmem:[#allocation2 + $0x8] sm:$0xff]
    %v1229 = vld [vmem:[#allocation2 + $0x10] sm:$0xff]
    %v1230 = vld [vmem:[#allocation2 + $0x18] sm:$0xff]
    %v1231 = vld [vmem:[%s3] sm:$0x1]
    %v1233 = vperm.slane %v1231, 0
    %vm1235 = vcmask 261120
    %v1237 = vsel %vm1235, %v1227, 0
    %v1240 = vsel %vm1235, %v1228, 0
    %v1243 = vsel %vm1235, %v1229, 0
    %v1246 = vsel %vm1235, %v1230, 0
    %1248 = vmatpush.msra.mxu0 0.0
    %1249 = vmatpush.msra.mxu0 0.0
    %1250 = vmatpush.msra.mxu0 0.0
    %1251 = vmatpush.msra.mxu0 0.0
    %1252 = vmatpush.msra.mxu0 0.0
    %1253 = vmatpush.msra.mxu0 0.0
    %1254 = vmatpush.msra.mxu0 0.0
    %1255 = vmatpush.msra.mxu0 0.0
    %1256 = vmatpush.msra.mxu0 0.0
    %1257 = vmatpush.msra.mxu0 0.0
    %1258 = vmatpush.msra.mxu0 0.0
    %1259 = vmatpush.msra.mxu0 0.0
    %1260 = vmatpush.msra.mxu0 %v1225
    %1261 = vmatpush.msra.mxu0 %v1223
    %1262 = vmatpush.msra.mxu0 %v1220
    %1263 = vmatpush.msra.mxu0 %v1218
    %1264 = vmatmul.f32.gmra.mxu0 %v1237
    %v1265 = vpop.f32.mrf.mxu0
    %v1266 = vadd.f32 %v1233, %v1265
    %1267 = vmatmul.f32.gmra.mxu0 %v1240
    %v1268 = vpop.f32.mrf.mxu0
    %v1269 = vadd.f32 %v1233, %v1268
    %1270 = vmatmul.f32.gmra.mxu0 %v1243
    %v1271 = vpop.f32.mrf.mxu0
    %v1272 = vadd.f32 %v1233, %v1271
    %1273 = vmatmul.f32.gmra.mxu0 %v1246
    %v1274 = vpop.f32.mrf.mxu0
    %v1275 = vadd.f32 %v1233, %v1274
    %1276 = vdwg.mxu0
    %v1277 = vmax.f32 %v1266, 0.0
    %v1278 = vmax.f32 %v1269, 0.0
    %v1279 = vmax.f32 %v1272, 0.0
    %v1280 = vmax.f32 %v1275, 0.0
    %v1281 = vld [vmem:[#allocation8] sm:$0xff]
    %v1282 = vld [vmem:[#allocation8 + $0x8] sm:$0xff]
    %v1283 = vld [vmem:[#allocation8 + $0x10] sm:$0xff]
    %v1284 = vld [vmem:[#allocation8 + $0x18] sm:$0xff]
    %v1285 = vld [vmem:[#allocation8 + $0x20] sm:$0xff]
    %v1286 = vld [vmem:[#allocation8 + $0x28] sm:$0xff]
    %v1287 = vld [vmem:[#allocation8 + $0x30] sm:$0xff]
    %v1288 = vld [vmem:[#allocation8 + $0x38] sm:$0xff]
    %v1289 = vld [vmem:[#allocation8 + $0x40] sm:$0xff]
    %v1290 = vld [vmem:[#allocation8 + $0x48] sm:$0xff]
    %v1291 = vld [vmem:[#allocation8 + $0x50] sm:$0xff]
    %v1292 = vld [vmem:[#allocation8 + $0x58] sm:$0xff]
    %v1293 = vld [vmem:[#allocation8 + $0x60] sm:$0xff]
    %v1294 = vld [vmem:[#allocation8 + $0x68] sm:$0xff]
    %v1295 = vld [vmem:[#allocation8 + $0x70] sm:$0xff]
    %v1296 = vld [vmem:[#allocation8 + $0x78] sm:$0xff]
    %1297 = vmatpush.msra.mxu0 %v1296
    %1298 = vmatpush.msra.mxu0 %v1295
    %1299 = vmatpush.msra.mxu0 %v1294
    %1300 = vmatpush.msra.mxu0 %v1293
    %1301 = vmatpush.msra.mxu0 %v1292
    %1302 = vmatpush.msra.mxu0 %v1291
    %1303 = vmatpush.msra.mxu0 %v1290
    %1304 = vmatpush.msra.mxu0 %v1289
    %1305 = vmatpush.msra.mxu0 %v1288
    %1306 = vmatpush.msra.mxu0 %v1287
    %1307 = vmatpush.msra.mxu0 %v1286
    %1308 = vmatpush.msra.mxu0 %v1285
    %1309 = vmatpush.msra.mxu0 %v1284
    %1310 = vmatpush.msra.mxu0 %v1283
    %1311 = vmatpush.msra.mxu0 %v1282
    %1312 = vmatpush.msra.mxu0 %v1281
    %1313 = vmatmul.f32.gmra.mxu0 %v1277
    %v1314 = vpop.f32.mrf.mxu0
    %v1315 = vadd.f32 0.0, %v1314
    %1316 = vmatmul.f32.gmra.mxu0 %v1278
    %v1317 = vpop.f32.mrf.mxu0
    %v1318 = vadd.f32 0.0, %v1317
    %1319 = vmatmul.f32.gmra.mxu0 %v1279
    %v1320 = vpop.f32.mrf.mxu0
    %v1321 = vadd.f32 0.0, %v1320
    %1322 = vmatmul.f32.gmra.mxu0 %v1280
    %v1323 = vpop.f32.mrf.mxu0
    %v1324 = vadd.f32 0.0, %v1323
    %1325 = vdwg.mxu0
    %v1326 = vld [vmem:[%s5] sm:$0x1]
    %v1328 = vperm.slane %v1326, 0
    %1330 = vmatpush.msra.mxu0 0.0
    %1331 = vmatpush.msra.mxu0 0.0
    %1332 = vmatpush.msra.mxu0 0.0
    %1333 = vmatpush.msra.mxu0 0.0
    %1334 = vmatpush.msra.mxu0 0.0
    %1335 = vmatpush.msra.mxu0 0.0
    %1336 = vmatpush.msra.mxu0 0.0
    %1337 = vmatpush.msra.mxu0 0.0
    %1338 = vmatpush.msra.mxu0 0.0
    %1339 = vmatpush.msra.mxu0 0.0
    %1340 = vmatpush.msra.mxu0 0.0
    %1341 = vmatpush.msra.mxu0 0.0
    %1342 = vmatpush.msra.mxu0 %v1324
    %1343 = vmatpush.msra.mxu0 %v1321
    %1344 = vmatpush.msra.mxu0 %v1318
    %1345 = vmatpush.msra.mxu0 %v1315
    %1346 = vmatmul.f32.gmra.mxu0 %v1237
    %v1347 = vpop.f32.mrf.mxu0
    %v1348 = vadd.f32 %v1328, %v1347
    %1349 = vmatmul.f32.gmra.mxu0 %v1240
    %v1350 = vpop.f32.mrf.mxu0
    %v1351 = vadd.f32 %v1328, %v1350
    %1352 = vmatmul.f32.gmra.mxu0 %v1243
    %v1353 = vpop.f32.mrf.mxu0
    %v1354 = vadd.f32 %v1328, %v1353
    %1355 = vmatmul.f32.gmra.mxu0 %v1246
    %v1356 = vpop.f32.mrf.mxu0
    %v1357 = vadd.f32 %v1328, %v1356
    %1358 = vdwg.mxu0
    %1359 = vst [vmem:[#allocation10] sm:$0xff] %v1348
    %1360 = vst [vmem:[#allocation10 + $0x8] sm:$0xff] %v1351
    %1361 = vst [vmem:[#allocation10 + $0x10] sm:$0xff] %v1354
    %1362 = vst [vmem:[#allocation10 + $0x18] sm:$0xff] %v1357
    // Predicated region
    $region42: #{gcn_forward_small.1} parent=1 // pred_check
      _
    $region43: #{gcn_forward_small.1} parent=1 // pred_check_branch
      %1364 = sbr.rel (0) target = $region45
    $region44: #{gcn_forward_small.1} parent=1 // pred_region
      %1366 = vsyncadd [#allocation4], 0
      %s1367 = sshll.u32 [#allocation10], 4
      %s1368 = int_to_ptr.vmem [resolvable:$true] %s1367
      %s1369 = sshll.u32 %s6, 4
      %s1370 = int_to_ptr.hbm [resolvable:$true] %s1369
      %1375 = dma.vmem_to_hbm [thread:$0]  %s1368, 512, %s1370, [#allocation4], 128, 128, 8
    $region45: #{gcn_forward_small.1} parent=1 // pred_fallthru
      _
    // Predicated region
    $region46: #{gcn_forward_small.1} parent=1 // pred_check
      _
    $region47: #{gcn_forward_small.1} parent=1 // pred_check_branch
      %1377 = sbr.rel (0) target = $region49
    $region48: #{gcn_forward_small.1} parent=1 // pred_region
      %1379 = dma.done [#allocation4], 512
    $region49: #{gcn_forward_small.1} parent=1 // pred_fallthru
      _
    %1380 = vsyncpa [#allocation3], 1
    %1381 = vsyncpa [#allocation6], 1
    %1382 = vsyncpa [#allocation9], 1
    %1383 = vsyncpa [#allocation4], 1

</llo_original>
